<compile_context>
chip_gen: v6e
topology: v6e:2x2x1
jax: 0.10.0
libtpu: 0.0.40
codegen_flags: <defaults>
</compile_context>

<pallas_src>
import math
from functools import reduce

import jax
import jax.numpy as jnp
from jax.experimental import pallas as pl
from jax.experimental.pallas import tpu as pltpu


def prod(iterable, start=1):
    return reduce(lambda a, b: a * b, iterable, start)


_MIB = 1024 * 1024
_LANE_CANDIDATES = (4096, 2048, 1024, 512, 256, 128)


def _copy_kernel(x_ref, o_ref):
    # Identity copy of one lane-dense (tile_rows, cols) tile.
    o_ref[...] = x_ref[...]


def _sublane_multiple(dtype):
    itemsize = jnp.dtype(dtype).itemsize
    if itemsize >= 4:
        return 8                      # f32 / i32
    return 32 // itemsize             # 16 for bf16/f16, 32 for i8/fp8


def _tpu_budgets():
    """Generation-aware (per-buffer tile budget, scoped-VMEM limit) in bytes.

    v7x has only 64 MiB physical VMEM per TensorCore -> 10 MiB tiles and a
    48 MiB limit (2 arrays x 2 pipeline buffers ~= 40 MiB, with headroom).
    v5e/v6e have 128 MiB physical -> 12 MiB tiles and a 64 MiB limit.
    Unknown hardware -> the conservative (v7x-safe) values.
    """
    try:
        info = pltpu.get_tpu_info()
        vmem_cap = int(getattr(info, "vmem_capacity_bytes", 0))
    except Exception:
        vmem_cap = 0
    if vmem_cap >= 128 * _MIB:
        return 12 * _MIB, 64 * _MIB
    return 10 * _MIB, 48 * _MIB


def _num_tensorcores():
    """Best-effort TensorCores-per-chip count (2 on v7x, 1 on v5e/v6e)."""
    try:
        info = pltpu.get_tpu_info()
    except Exception:
        return 1
    for name in ("num_cores", "cores_per_chip", "num_tensorcores",
                 "tensorcores_per_chip"):
        v = getattr(info, name, None)
        if isinstance(v, int) and v > 0:
            return v
    return 1


def _choose_layout(n_elems, dtype, budget_bytes):
    """Factor n_elems into a lane-dense (rows, cols) slab plus a sublane-dense
    row tile whose double-buffered in+out working set fits the VMEM budget.

    Returns ((rows, cols), tile_rows, n_tiles), or None if n_elems % 128 != 0
    (caller pads in that case).
    """
    itemsize = jnp.dtype(dtype).itemsize
    sub = _sublane_multiple(dtype)

    cols = None
    # Prefer the largest lane-dense cols that also leaves rows sublane-dense
    # (every tile load/store fully unmasked) ...
    for c in _LANE_CANDIDATES:
        if n_elems % c == 0 and (n_elems // c) % sub == 0:
            cols = c
            break
    # ... otherwise accept any lane-dense cols: only the final (partial) row
    # tile of the cdiv grid is masked, the bulk of the copy stays unmasked.
    if cols is None:
        for c in _LANE_CANDIDATES:
            if n_elems % c == 0:
                cols = c
                break
    if cols is None:
        return None

    rows = n_elems // cols

    # Largest sublane-dense row tile within the per-buffer budget.
    max_tile_rows = max(sub, (budget_bytes // (cols * itemsize)) // sub * sub)
    if rows <= max_tile_rows:
        tile_rows = rows              # full-dim block is always legal
    else:
        tile_rows = max_tile_rows     # partial last block handled by Pallas
    return (rows, cols), tile_rows, pl.cdiv(rows, tile_rows)


def _copy_2d(x_2d, tile_rows, vmem_limit_bytes, semantics):
    rows, cols = x_2d.shape
    n_tiles = pl.cdiv(rows, tile_rows)
    itemsize = jnp.dtype(x_2d.dtype).itemsize
    return pl.pallas_call(
        _copy_kernel,
        out_shape=jax.ShapeDtypeStruct((rows, cols), x_2d.dtype),
        grid=(n_tiles,),
        in_specs=[pl.BlockSpec((tile_rows, cols), lambda i: (i, 0))],
        out_specs=pl.BlockSpec((tile_rows, cols), lambda i: (i, 0)),
        compiler_params=pltpu.CompilerParams(
            dimension_semantics=semantics,
            vmem_limit_bytes=vmem_limit_bytes,
        ),
        cost_estimate=pl.CostEstimate(
            flops=0, transcendentals=0,
            bytes_accessed=2 * rows * cols * itemsize,
        ),
    )(x_2d)


def _run_copy(x_2d, tile_rows, vmem_limit_bytes):
    rows, _ = x_2d.shape
    n_tiles = pl.cdiv(rows, tile_rows)
    candidates = []
    if n_tiles >= 2 and _num_tensorcores() > 1:
        # v7x: shard the independent row tiles across both TensorCores
        # (HBM bandwidth is per-TC, so this approaches ~2x aggregate copy BW).
        candidates.append((pltpu.CORE_PARALLEL,))
    candidates.append(("parallel",))
    last_exc = None
    for sem in candidates:
        try:
            return _copy_2d(x_2d, tile_rows, vmem_limit_bytes, sem)
        except Exception as e:   # best-effort CORE_PARALLEL; fall back cleanly
            last_exc = e
    raise last_exc


def pallas_reshape(x, input_shape, output_shape, *, copy=True, alias_input=False):
    """Equivalent of Reshape(input_shape, output_shape).forward(x).

    copy=False        : metadata-only reshape (fastest, no kernel, no HBM traffic).
    alias_input=True  : short-circuited to the metadata-only reshape — an
                        aliased identity copy would read+rewrite every byte of
                        HBM for a semantic no-op.
    copy=True (default): explicit, pipelined, near-roofline streaming copy.
    """
    assert isinstance(input_shape, tuple)
    assert isinstance(output_shape, tuple)
    assert prod(input_shape) == prod(output_shape)
    if tuple(x.shape[1:]) != tuple(input_shape):
        raise Exception(
            f"Reshape: expected input size {input_shape} but got "
            f"{tuple(x.shape[1:])} instead"
        )

    B = x.shape[0]
    if not copy or alias_input:
        return x.reshape(B, *output_shape)

    n = B * prod(input_shape)
    budget_bytes, vmem_limit_bytes = _tpu_budgets()
    layout = _choose_layout(n, x.dtype, budget_bytes)

    if layout is None:
        # Total element count not divisible by 128: pad the flat stream up to
        # a lane/sublane-dense multiple, run the tiled copy, slice back.
        # TODO(synk): a masked in-kernel tail store would avoid the extra
        # pad/slice HBM traffic for very large non-128-divisible inputs.
        sub = _sublane_multiple(x.dtype)
        chunk = sub * 128
        n_pad = pl.cdiv(n, chunk) * chunk
        x_flat = jnp.pad(x.reshape(-1), (0, n_pad - n))
        (rows, cols), tile_rows, _ = _choose_layout(n_pad, x.dtype, budget_bytes)
        out_flat = _run_copy(
            x_flat.reshape(rows, cols), tile_rows, vmem_limit_bytes
        ).reshape(-1)[:n]
        return out_flat.reshape(B, *output_shape)

    (rows, cols), tile_rows, _ = layout
    # Row-major flatten/refactor: identical element order to torch .view.
    x_2d = x.reshape(rows, cols)
    out_2d = _run_copy(x_2d, tile_rows, vmem_limit_bytes)
    return out_2d.reshape(B, *output_shape)


if __name__ == "__main__":
    # Shapes consistent with the module: (4, 16, 16) -> (16, 64), batch=2.
    input_shape = (4, 16, 16)
    output_shape = (16, 64)
    B = 2

    key = jax.random.PRNGKey(0)
    x = jax.random.normal(key, (B, *input_shape), dtype=jnp.float32)

    # Reference: plain JAX reshape (row-major, same as torch .view).
    y_ref = x.reshape(B, *output_shape)

    # 1) Explicit tiled copy kernel (default path).
    y = jax.block_until_ready(pallas_reshape(x, input_shape, output_shape))
    assert y.shape == (B, *output_shape), y.shape
    assert y.dtype == x.dtype
    assert bool(jnp.array_equal(y, y_ref))

    # 2) alias_input path: short-circuited to the metadata-only view.
    y_alias = jax.block_until_ready(
        pallas_reshape(x, input_shape, output_shape, alias_input=True)
    )
    assert bool(jnp.array_equal(y_alias, y_ref))

    # 3) Metadata-only fast path (no kernel, zero HBM traffic).
    y_meta = jax.block_until_ready(
        pallas_reshape(x, input_shape, output_shape, copy=False)
    )
    assert bool(jnp.array_equal(y_meta, y_ref))

    # 4) Non-128-divisible element count exercises the padded/tiled fallback.
    in_shape2 = (3, 5, 7)           # 2*105 = 210 elements, not % 128
    out_shape2 = (105,)
    x2 = jax.random.normal(jax.random.PRNGKey(1), (B, *in_shape2), jnp.float32)
    y2 = jax.block_until_ready(pallas_reshape(x2, in_shape2, out_shape2))
    assert y2.shape == (B, *out_shape2)
    assert bool(jnp.array_equal(y2, x2.reshape(B, *out_shape2)))

    print("KERNEL_OK")
</pallas_src>

<mosaic_0001>
module attributes {stable_mosaic.version = 11 : i64} {
  func.func @_copy_kernel(%arg0: i32, %arg1: memref<8x256xf32, #tpu.memory_space<vmem>>, %arg2: memref<8x256xf32, #tpu.memory_space<vmem>>) attributes {dimension_semantics = [#tpu.dimension_semantics<parallel>], iteration_bounds = array<i64: 1>, scalar_prefetch = 0 : i64, scratch_operands = 0 : i64, tpu.core_type = #tpu.core_type<tc>, window_params = [{transform_indices = @transform_0, window_bounds = array<i64: 8, 256>}, {transform_indices = @transform_1, window_bounds = array<i64: 8, 256>}]} {
    %c0 = arith.constant 0 : index
    %c0_0 = arith.constant 0 : index
    %0 = vector.load %arg1[%c0, %c0_0] : memref<8x256xf32, #tpu.memory_space<vmem>>, vector<8x256xf32>
    %c0_1 = arith.constant 0 : index
    %c0_2 = arith.constant 0 : index
    %1 = vector.load %arg2[%c0_1, %c0_2] : memref<8x256xf32, #tpu.memory_space<vmem>>, vector<8x256xf32>
    tpu.vector_store %arg2[%c0_1, %c0_2], %0 {strides = array<i32>} : memref<8x256xf32, #tpu.memory_space<vmem>>, vector<8x256xf32>,
    return
  }
  func.func @transform_0(%arg0: i32) -> (i32, i32) {
    %c0_i32 = arith.constant 0 : i32
    %c0_i32_0 = arith.constant 0 : i32
    return %arg0, %c0_i32 : i32, i32
  }
  func.func @transform_1(%arg0: i32) -> (i32, i32) {
    %c0_i32 = arith.constant 0 : i32
    %c0_i32_0 = arith.constant 0 : i32
    return %arg0, %c0_i32 : i32, i32
  }
}

</mosaic_0001>

<llo_original>
// kernel: tpu_custom_call.1
$region0: #{tpu_custom_call.1}
  #allocation0 [shape = 'u32[]', space=smem, size = 0x4, offset = 0x4, fixed_abs, tag = 'smem constant byte address 0x4 - core index']
  #allocation1 [shape = 'u32[144,128]{1,0:T(1,128)}', space=vmem, size = 0x12000, scoped, tag = 'internal scratch']
  %s0 = inlined_call_operand.hbm [shape: f32[8,256], index: 0, kind: input, shape index: {}]
  %s1 = inlined_call_operand.hbm [shape: f32[8,256], index: 1, kind: output, shape index: {}]
  %s2 = sld [smem:[#allocation0]]
  $region18: #{tpu_custom_call.1} parent=0
    _
  %s4 = ssub.s32 1, %s2
  %s5 = scalar_select 0, %s4, %s2
  $region1: #{tpu_custom_call.1} parent=0
    #allocation2 [shape = 'u8[8192]{0}', space=vmem, size = 0x2000, scoped, tag = 'input window, operand 0, single buffered']
    #allocation3 [shape = 's32[1]{0}', space=sflag, size = 0x4, scoped, tag = 'scoped memory for tpu_custom_call.1']
    #allocation4 [shape = 's32[1]{0}', space=sflag, size = 0x4, scoped, tag = 'scoped memory for tpu_custom_call.1']
    #allocation5 [shape = 'u8[8192]{0}', space=vmem, size = 0x2000, scoped, tag = 'output window, operand 0, single buffered']
    %6 = vsyncpa [#allocation3], 0
    %7 = vsyncpa [#allocation4], 0
    // Predicated region
    $region2: #{tpu_custom_call.1} parent=1 // pred_check
      _
    $region3: #{tpu_custom_call.1} parent=1 // pred_check_branch
      %9 = sbr.rel (0) target = $region5
    $region4: #{tpu_custom_call.1} parent=1 // pred_region
      %s11 = ssub.s32 256, 256
      %12 = vsyncadd [#allocation3], %s11
      %s14 = sshll.u32 [#allocation2], 4
      %s15 = int_to_ptr.vmem [resolvable:$true] %s14
      %17 = dma.hbm_to_vmem [thread:$0]  %s0, 256, %s15, [#allocation3]
    $region5: #{tpu_custom_call.1} parent=1 // pred_fallthru
      _
    // Predicated region
    $region6: #{tpu_custom_call.1} parent=1 // pred_check
      _
    $region7: #{tpu_custom_call.1} parent=1 // pred_check_branch
      %19 = sbr.rel (0) target = $region9
    $region8: #{tpu_custom_call.1} parent=1 // pred_region
      %20 = dma.done [#allocation3], 256
    $region9: #{tpu_custom_call.1} parent=1 // pred_fallthru
      _
    %v21 = vld [vmem:[#allocation2] sm:$0xff]
    %v22 = vld [vmem:[#allocation2 + $0x8] sm:$0xff]
    %23 = vst [vmem:[#allocation5] sm:$0xff] %v21
    %24 = vst [vmem:[#allocation5 + $0x8] sm:$0xff] %v22
    // Predicated region
    $region10: #{tpu_custom_call.1} parent=1 // pred_check
      _
    $region11: #{tpu_custom_call.1} parent=1 // pred_check_branch
      %26 = sbr.rel (0) target = $region13
    $region12: #{tpu_custom_call.1} parent=1 // pred_region
      %s28 = ssub.s32 256, 256
      %29 = vsyncadd [#allocation4], %s28
      %s31 = sshll.u32 [#allocation5], 4
      %s32 = int_to_ptr.vmem [resolvable:$true] %s31
      %34 = dma.vmem_to_hbm [thread:$0]  %s32, 256, %s1, [#allocation4]
    $region13: #{tpu_custom_call.1} parent=1 // pred_fallthru
      _
    // Predicated region
    $region14: #{tpu_custom_call.1} parent=1 // pred_check
      _
    $region15: #{tpu_custom_call.1} parent=1 // pred_check_branch
      %36 = sbr.rel (0) target = $region17
    $region16: #{tpu_custom_call.1} parent=1 // pred_region
      %37 = dma.done [#allocation4], 256
    $region17: #{tpu_custom_call.1} parent=1 // pred_fallthru
      _
    %38 = vsyncpa [#allocation3], 1
    %39 = vsyncpa [#allocation4], 1

</llo_original>
